<compile_context>
chip_gen: v6e
topology: v6e:2x2x1
jax: 0.10.0
libtpu: 0.0.40
codegen_flags: <defaults>
</compile_context>

<pallas_src>
import functools

import numpy as np
import jax
import jax.numpy as jnp
from jax.experimental import pallas as pl
from jax.experimental.pallas import tpu as pltpu

LANE = 128          # vreg lane width
MAX_TILE_R = 512    # 512x128 f32 block = 256 KiB; ~85% of HBM roofline on v6e


def _round_up(n, m):
    return ((n + m - 1) // m) * m


# ----------------------------------------------------------------------------
# Mesh construction (plain numpy glue, mirrors createHiveFlatMesh /
# cutHiveMeshWithPoses semantics: flat square grid, cut by distance to poses).
# ----------------------------------------------------------------------------
def create_square_flat_mesh(bev_x_length, bev_y_length, resolution):
    nx = int(round(bev_x_length / resolution)) + 1
    ny = int(round(bev_y_length / resolution)) + 1
    xs = np.arange(nx, dtype=np.float32) * resolution
    ys = np.arange(ny, dtype=np.float32) * resolution
    gx, gy = np.meshgrid(xs, ys, indexing="ij")
    verts = np.stack(
        [gx.ravel(), gy.ravel(), np.zeros(gx.size, dtype=np.float32)], axis=1
    ).astype(np.float32)
    faces = []
    for i in range(nx - 1):
        for j in range(ny - 1):
            v00 = i * ny + j
            v01 = v00 + 1
            v10 = v00 + ny
            v11 = v10 + 1
            faces.append([v00, v10, v11])
            faces.append([v00, v11, v01])
    faces = np.asarray(faces, dtype=np.int32)
    return verts, faces, (nx, ny)


def cut_mesh_with_poses(verts, faces, pose_xy, cut_range):
    # keep vertices within cut_range of any pose; keep faces whose vertices all survive
    d = np.linalg.norm(verts[None, :, :2] - pose_xy[:, None, :], axis=-1)
    keep = (d.min(axis=0) <= cut_range)
    new_idx = -np.ones(verts.shape[0], dtype=np.int64)
    new_idx[keep] = np.arange(int(keep.sum()))
    face_keep = keep[faces].all(axis=1)
    new_faces = new_idx[faces[face_keep]].astype(np.int32)
    return verts[keep], new_faces


# ----------------------------------------------------------------------------
# Pallas kernel: elementwise (tanh(x) + 1) / 2, replicated over the batch axis
# directly from VMEM (input block fetched once per row tile; B copies written).
# ----------------------------------------------------------------------------
def _tanh_rgb_kernel(x_ref, o_ref):
    # x_ref: (TILE_R, LANE); o_ref: (1, TILE_R, LANE)
    # tanh -> EUP slot; affine (+1)*0.5 -> VPU (free filler under the mem bound)
    o_ref[0] = (jnp.tanh(x_ref[...]) + 1.0) * 0.5


@functools.partial(jax.jit, static_argnames=("batch_size", "tile_r", "num_valid"))
def constrain_rgb_batched(slab, *, batch_size, tile_r, num_valid):
    """slab: pre-padded (R, 128) f32.  Returns (batch_size, V, 3) f32."""
    rows, lane = slab.shape
    grid = (rows // tile_r, batch_size)   # batch innermost: same input block
                                          # across consecutive steps -> no re-DMA
    out = pl.pallas_call(
        _tanh_rgb_kernel,
        out_shape=jax.ShapeDtypeStruct((batch_size, rows, lane), slab.dtype),
        grid=grid,
        in_specs=[pl.BlockSpec((tile_r, lane), lambda i, b: (i, 0))],
        out_specs=pl.BlockSpec((1, tile_r, lane), lambda i, b: (b, i, 0)),
        compiler_params=pltpu.CompilerParams(
            dimension_semantics=("parallel", "parallel")),
    )(slab)
    v = num_valid // 3
    return out.reshape(batch_size, rows * lane)[:, :num_valid].reshape(
        batch_size, v, 3)


# ----------------------------------------------------------------------------
# SquareFlatGridRGB (JAX version)
# ----------------------------------------------------------------------------
class SquareFlatGridRGB:
    def __init__(self, bev_x_length, bev_y_length, pose_xy, resolution,
                 cut_range, num_classes=None, *, rng_key=None):
        self.bev_x_length = bev_x_length
        self.bev_y_length = bev_y_length
        self.resolution = resolution

        verts, faces, self.bev_size_pixel = create_square_flat_mesh(
            bev_x_length, bev_y_length, resolution)
        print(f"Before cutting: {verts.shape[0]} vertices, {faces.shape[0]} faces")
        verts, faces = cut_mesh_with_poses(verts, faces, pose_xy, cut_range)
        print(f"After cutting: {verts.shape[0]} vertices, {faces.shape[0]} faces")

        norm_x = verts[:, 0] / self.bev_x_length * 2.0 - 1.0
        norm_y = verts[:, 1] / self.bev_y_length * 2.0 - 1.0
        self.norm_xy = jnp.asarray(
            np.stack([norm_x, norm_y], axis=1), dtype=jnp.float32)
        self.vertices = jnp.asarray(verts, dtype=jnp.float32)          # (V, 3)
        self.faces = jnp.asarray(faces, dtype=jnp.int32)               # (F, 3)

        # nn.Parameter(torch.zeros_like(self.vertices)[None]) -> shape (1, V, 3).
        # PyTorch inits zeros; deterministic small random values used here so
        # the kernel compute is non-degenerate for the check.
        if rng_key is None:
            rng_key = jax.random.PRNGKey(0)
        self.vertices_rgb = 0.5 * jax.random.normal(
            rng_key, (1,) + self.vertices.shape, dtype=jnp.float32)

        # Pre-pad the parameter ONCE into a lane-dense (R, 128) slab.
        self.num_rgb = int(self.vertices_rgb.size)                     # V * 3
        rows_min = _round_up(max((self.num_rgb + LANE - 1) // LANE, 1), 8)
        if rows_min >= MAX_TILE_R:
            self.tile_r = MAX_TILE_R
            rows = _round_up(rows_min, MAX_TILE_R)
        else:
            self.tile_r = rows_min           # tiny V: single block per batch elem
            rows = rows_min
        flat = self.vertices_rgb.reshape(-1)
        slab = jnp.zeros((rows * LANE,), dtype=jnp.float32)
        slab = slab.at[: self.num_rgb].set(flat)
        self.rgb_slab = slab.reshape(rows, LANE)                       # (R, 128)

        self._mesh_geom_cache = {}   # batch_size -> (verts_b, faces_b) broadcast views
        self.texture = None
        self.mesh = None

    def forward(self, batch_size=1):
        # hot path (Pallas): (tanh(vertices_rgb) + 1) / 2, batch-replicated in-kernel
        tex_b = constrain_rgb_batched(
            self.rgb_slab, batch_size=batch_size, tile_r=self.tile_r,
            num_valid=self.num_rgb)                                    # (B, V, 3)

        # Static geometry: broadcast views, computed once per batch_size.
        if batch_size not in self._mesh_geom_cache:
            verts_b = jnp.broadcast_to(
                self.vertices[None], (batch_size,) + self.vertices.shape)
            faces_b = jnp.broadcast_to(
                self.faces[None], (batch_size,) + self.faces.shape)
            self._mesh_geom_cache[batch_size] = (verts_b, faces_b)
        verts_b, faces_b = self._mesh_geom_cache[batch_size]

        # TODO(synk): pytorch3d TexturesVertex / Meshes containers have no Pallas
        # equivalent; we return the batched (extended) tensors they would hold.
        self.texture = tex_b
        self.mesh = {"verts": verts_b, "faces": faces_b, "textures": tex_b}
        return self.mesh


# ----------------------------------------------------------------------------
if __name__ == "__main__":
    key = jax.random.PRNGKey(0)

    # Small synthetic config: 4m x 4m grid at 0.5m resolution, one pose at the
    # center, cut range 2.5m  ->  V = 77 vertices after cutting.
    module = SquareFlatGridRGB(
        bev_x_length=4.0,
        bev_y_length=4.0,
        pose_xy=np.array([[2.0, 2.0]], dtype=np.float32),
        resolution=0.5,
        cut_range=2.5,
        rng_key=key,
    )

    mesh = module.forward(batch_size=2)
    jax.block_until_ready(mesh["textures"])

    # correctness check against pure-JAX reference (every batch element)
    ref = (jnp.tanh(module.vertices_rgb) + 1.0) * 0.5                  # (1, V, 3)
    for b in range(2):
        np.testing.assert_allclose(
            np.asarray(mesh["textures"][b]), np.asarray(ref[0]),
            rtol=1e-5, atol=1e-5)
    assert mesh["textures"].shape == (2,) + module.vertices.shape
    assert mesh["verts"].shape == (2,) + module.vertices.shape
    assert mesh["faces"].shape == (2,) + module.faces.shape

    print("KERNEL_OK")
</pallas_src>

<mosaic_0001>
module attributes {stable_mosaic.version = 11 : i64} {
  func.func @_tanh_rgb_kernel(%arg0: i32, %arg1: i32, %arg2: memref<8x128xf32, #tpu.memory_space<vmem>>, %arg3: memref<1x8x128xf32, #tpu.memory_space<vmem>>) attributes {dimension_semantics = [#tpu.dimension_semantics<parallel>, #tpu.dimension_semantics<parallel>], iteration_bounds = array<i64: 1, 2>, scalar_prefetch = 0 : i64, scratch_operands = 0 : i64, tpu.core_type = #tpu.core_type<tc>, window_params = [{transform_indices = @transform_0, window_bounds = array<i64: 8, 128>}, {transform_indices = @transform_1, window_bounds = array<i64: 1, 8, 128>}]} {
    %c0 = arith.constant 0 : index
    %c0_0 = arith.constant 0 : index
    %0 = vector.load %arg2[%c0, %c0_0] : memref<8x128xf32, #tpu.memory_space<vmem>>, vector<8x128xf32>
    %1 = math.tanh %0 : vector<8x128xf32>
    %cst = arith.constant 1.000000e+00 : f32
    %2 = vector.broadcast %cst : f32 to vector<8x128xf32>
    %3 = arith.addf %1, %2 : vector<8x128xf32>
    %cst_1 = arith.constant 5.000000e-01 : f32
    %4 = vector.broadcast %cst_1 : f32 to vector<8x128xf32>
    %5 = arith.mulf %3, %4 : vector<8x128xf32>
    %c0_2 = arith.constant 0 : index
    %c0_3 = arith.constant 0 : index
    %c0_4 = arith.constant 0 : index
    %6 = vector.load %arg3[%c0_2, %c0_3, %c0_4] : memref<1x8x128xf32, #tpu.memory_space<vmem>>, vector<1x8x128xf32>
    %7 = vector.shape_cast %6 : vector<1x8x128xf32> to vector<8x128xf32>
    %8 = vector.shape_cast %5 : vector<8x128xf32> to vector<1x8x128xf32>
    tpu.vector_store %arg3[%c0_2, %c0_3, %c0_4], %8 {strides = array<i32>} : memref<1x8x128xf32, #tpu.memory_space<vmem>>, vector<1x8x128xf32>,
    return
  }
  func.func @transform_0(%arg0: i32, %arg1: i32) -> (i32, i32) {
    %c0_i32 = arith.constant 0 : i32
    %c0_i32_0 = arith.constant 0 : i32
    return %arg0, %c0_i32 : i32, i32
  }
  func.func @transform_1(%arg0: i32, %arg1: i32) -> (i32, i32, i32) {
    %c0_i32 = arith.constant 0 : i32
    %c0_i32_0 = arith.constant 0 : i32
    return %arg1, %arg0, %c0_i32 : i32, i32, i32
  }
}

</mosaic_0001>

<llo_original>
// kernel: constrain_rgb_batched.1
$region0: #{constrain_rgb_batched.1}
  #allocation0 [shape = 'u32[]', space=smem, size = 0x4, offset = 0x4, fixed_abs, tag = 'smem constant byte address 0x4 - core index']
  #allocation1 [shape = 'u32[144,128]{1,0:T(1,128)}', space=vmem, size = 0x12000, scoped, tag = 'internal scratch']
  %s0 = inlined_call_operand.hbm [shape: f32[8,128], index: 0, kind: input, shape index: {}]
  %s1 = inlined_call_operand.vmem [shape: f32[2,8,128], index: 1, kind: output, shape index: {}]
  %s2 = sld [smem:[#allocation0]]
  $region41: #{constrain_rgb_batched.1} parent=0
    _
  %s4 = ssub.s32 1, %s2
  %s5 = scalar_select 0, %s4, %s2
  $region1: #{constrain_rgb_batched.1} parent=0
    #allocation2 [shape = 'u8[4096]{0}', space=vmem, size = 0x1000, scoped, tag = 'input window, operand 0, single buffered']
    #allocation3 [shape = 's32[2]{0}', space=sflag, size = 0x8, scoped, tag = 'scoped memory for constrain_rgb_batched.1']
    %6 = vsyncpa [#allocation3], 0
    loop: start=0, step=1, limit=4
    $region2: #{constrain_rgb_batched.1} parent=1 // loop_pre_header
      _
    $region3: #{constrain_rgb_batched.1} parent=1 // loop_header
      %s8 = sphi 0, %s12
      %p9 = scmp.ge.s32.totalorder %s8, 4
      %s15 = sphi 0, %s27
      %s16 = sphi 0, %s23
      %s17 = sphi 0, %s15
      %s18 = sphi 0, %s16
      %s19 = sphi 0, %s17
      %s20 = sphi 0, %s18
      %s30 = sphi 0, %s32
      %s33 = sphi 0, %s30
      %s34 = sphi 0, %s33
      %s50 = sphi 0, %s34
      %s58 = sphi 0, %s60
      %s61 = sphi 0, %s58
      %s62 = sphi 0, %s61
      %s78 = sphi 0, %s62
    $region4: #{constrain_rgb_batched.1} parent=1 // loop_header_branch
      %11 = sbr.rel (%p9) target = $region8
    $region5: #{constrain_rgb_batched.1} parent=1 // loop_body
      %s13 = ssub.s32 %s8, 1
      %s14 = ssub.s32 %s8, 2
      %s21 = sadd.s32 1, %s16
      %p22 = scmp.ge.s32.totalorder %s21, 2
      %s23 = scalar_select %p22, 0, %s21
      %s24 = sadd.s32 1, %s15
      %s25 = scalar_select %p22, %s24, %s15
      %p26 = scmp.ge.s32.totalorder %s25, 1
      %s27 = scalar_select %p26, 0, %s25
      %s28 = ssub.s32 %s15, %s27
      %p29 = scmp.eq.s32.totalorder %s28, 0
      %s31 = sadd.s32 %s30, 1
      %s32 = scalar_select %p29, %s30, %s31
      %p35 = pneg %p29
      %p36 = scmp.eq.s32.totalorder %s8, 1
      %p37 = por %p35, %p36
      %p38 = scmp.ne.s32.totalorder %s30, %s33
      %p39 = scmp.eq.s32.totalorder %s8, 0
      %p40 = por %p38, %p39
      %p41 = scmp.ne.s32.totalorder %s30, %s33
      %p42 = scmp.eq.s32.totalorder %s13, 1
      %p43 = por %p41, %p42
      %p44 = scmp.ne.s32.totalorder %s33, %s34
      %p45 = scmp.eq.s32.totalorder %s13, 0
      %p46 = por %p44, %p45
      %p47 = scmp.ne.s32.totalorder %s33, %s34
      %p48 = scmp.eq.s32.totalorder %s14, 1
      %p49 = por %p47, %p48
      %p51 = scmp.ne.s32.totalorder %s34, %s50
      %p52 = scmp.eq.s32.totalorder %s14, 0
      %p53 = por %p51, %p52
      %s54 = ssub.s32 %s16, %s23
      %s55 = ssub.s32 %s15, %s27
      %s56 = sor.u32 %s54, %s55
      %p57 = scmp.eq.s32.totalorder %s56, 0
      %s59 = sadd.s32 %s58, 1
      %s60 = scalar_select %p57, %s58, %s59
      %p63 = pneg %p57
      %p64 = scmp.eq.s32.totalorder %s8, 1
      %p65 = por %p63, %p64
      %p66 = scmp.ne.s32.totalorder %s58, %s61
      %p67 = scmp.eq.s32.totalorder %s8, 0
      %p68 = por %p66, %p67
      %p69 = scmp.ne.s32.totalorder %s58, %s61
      %p70 = scmp.eq.s32.totalorder %s13, 1
      %p71 = por %p69, %p70
      %p72 = scmp.ne.s32.totalorder %s61, %s62
      %p73 = scmp.eq.s32.totalorder %s13, 0
      %p74 = por %p72, %p73
      %p75 = scmp.ne.s32.totalorder %s61, %s62
      %p76 = scmp.eq.s32.totalorder %s14, 1
      %p77 = por %p75, %p76
      %p79 = scmp.ne.s32.totalorder %s62, %s78
      %p80 = scmp.eq.s32.totalorder %s14, 0
      %p81 = por %p79, %p80
      %p82 = scmp.le.s32.totalorder 1, %s8
      %p83 = scmp.lt.s32.totalorder %s8, 3
      %p84 = pnand %p82, %p83
      %p85 = pneg %p84
      // Predicated region
      $region9: #{constrain_rgb_batched.1} parent=5 // pred_check
        _
      $region10: #{constrain_rgb_batched.1} parent=5 // pred_check_branch
        %87 = sbr.rel (%p84) target = $region12
      $region11: #{constrain_rgb_batched.1} parent=5 // pred_region
        %s88 = ssub.s32 %s8, 1
        // Predicated region
        $region13: #{constrain_rgb_batched.1} parent=11 // pred_check
          %p89 = pneg %p46
        $region14: #{constrain_rgb_batched.1} parent=11 // pred_check_branch
          %91 = sbr.rel (%p89) target = $region16
        $region15: #{constrain_rgb_batched.1} parent=11 // pred_region
          %s93 = ssub.s32 128, 128
          %94 = vsyncadd [#allocation3], %s93
          %s95 = smul.addr %s17, 128
          %s96 = scalar_lea.hbm %s0, %s95
          %s98 = sshll.u32 [#allocation2], 4
          %s99 = int_to_ptr.vmem [resolvable:$true] %s98
          %101 = dma.hbm_to_vmem [thread:$0]  %s96, 128, %s99, [#allocation3]
        $region16: #{constrain_rgb_batched.1} parent=11 // pred_fallthru
          _
      $region12: #{constrain_rgb_batched.1} parent=5 // pred_fallthru
        _
      %p102 = scmp.lt.s32.totalorder %s8, 2
      // Predicated region
      $region17: #{constrain_rgb_batched.1} parent=5 // pred_check
        %p103 = pneg %p102
      $region18: #{constrain_rgb_batched.1} parent=5 // pred_check_branch
        %105 = sbr.rel (%p103) target = $region20
      $region19: #{constrain_rgb_batched.1} parent=5 // pred_region
        _
      $region20: #{constrain_rgb_batched.1} parent=5 // pred_fallthru
        _
      %p106 = scmp.le.s32.totalorder 1, %s8
      %p107 = scmp.lt.s32.totalorder %s8, 3
      %p108 = pnand %p106, %p107
      %p109 = pneg %p108
      // Predicated region
      $region21: #{constrain_rgb_batched.1} parent=5 // pred_check
        _
      $region22: #{constrain_rgb_batched.1} parent=5 // pred_check_branch
        %111 = sbr.rel (%p108) target = $region24
      $region23: #{constrain_rgb_batched.1} parent=5 // pred_region
        %s112 = ssub.s32 %s8, 1
        // Predicated region
        $region25: #{constrain_rgb_batched.1} parent=23 // pred_check
          %p113 = pneg %p46
        $region26: #{constrain_rgb_batched.1} parent=23 // pred_check_branch
          %115 = sbr.rel (%p113) target = $region28
        $region27: #{constrain_rgb_batched.1} parent=23 // pred_region
          %116 = dma.done [#allocation3], 128
        $region28: #{constrain_rgb_batched.1} parent=23 // pred_fallthru
          _
        %p117 = pneg %p46
        %p118 = pneg %p43
        %p119 = pneg %p74
        %p120 = pneg %p71
        %p121 = scmp.lt.s32.totalorder %s18, 1
        %s122 = scalar_select %p121, %s18, 1
        %p123 = scmp.lt.s32.totalorder %s17, 0
        %s124 = scalar_select %p123, %s17, 0
        %s125 = sadd.s32 %s124, %s122
        %s126 = smul.addr %s125, 8
        %s127 = scalar_lea.vmem %s1, %s126
        %p128 = scmp.lt.s32.totalorder %s18, 1
        %s129 = scalar_select %p128, %s18, 1
        %p130 = scmp.lt.s32.totalorder %s17, 0
        %s131 = scalar_select %p130, %s17, 0
        %s132 = sadd.s32 %s131, %s129
        %s133 = smul.addr %s132, 8
        %s134 = scalar_lea.vmem %s1, %s133
        %v135 = vld [vmem:[#allocation2] sm:$0xff]
        %v136 = vtanh.pop %v135
        %v137 = vadd.f32 %v136, 1.0
        %v138 = vmul.f32 %v137, 0.5
        %139 = vst [vmem:[%s134] sm:$0xff] %v138
        %p140 = scmp.lt.s32.totalorder %s18, 1
        %s141 = scalar_select %p140, %s18, 1
        %p142 = scmp.lt.s32.totalorder %s17, 0
        %s143 = scalar_select %p142, %s17, 0
        %s144 = sadd.s32 %s143, %s141
        %s145 = smul.addr %s144, 8
        %s146 = scalar_lea.vmem %s1, %s145
        // Predicated region
        $region29: #{constrain_rgb_batched.1} parent=23 // pred_check
          %p147 = pneg %p71
        $region30: #{constrain_rgb_batched.1} parent=23 // pred_check_branch
          %149 = sbr.rel (%p147) target = $region32
        $region31: #{constrain_rgb_batched.1} parent=23 // pred_region
          _
        $region32: #{constrain_rgb_batched.1} parent=23 // pred_fallthru
          _
      $region24: #{constrain_rgb_batched.1} parent=5 // pred_fallthru
        _
      %p150 = scmp.le.s32.totalorder 2, %s8
      // Predicated region
      $region33: #{constrain_rgb_batched.1} parent=5 // pred_check
        %p151 = pneg %p150
      $region34: #{constrain_rgb_batched.1} parent=5 // pred_check_branch
        %153 = sbr.rel (%p151) target = $region36
      $region35: #{constrain_rgb_batched.1} parent=5 // pred_region
        %s154 = ssub.s32 %s8, 2
        // Predicated region
        $region37: #{constrain_rgb_batched.1} parent=35 // pred_check
          %p155 = pneg %p77
        $region38: #{constrain_rgb_batched.1} parent=35 // pred_check_branch
          %157 = sbr.rel (%p155) target = $region40
        $region39: #{constrain_rgb_batched.1} parent=35 // pred_region
          %p158 = scmp.lt.s32.totalorder %s20, 1
          %s159 = scalar_select %p158, %s20, 1
          %p160 = scmp.lt.s32.totalorder %s19, 0
          %s161 = scalar_select %p160, %s19, 0
          %s162 = sadd.s32 %s161, %s159
          %s163 = smul.addr %s162, 8
          %s164 = scalar_lea.vmem %s1, %s163
        $region40: #{constrain_rgb_batched.1} parent=35 // pred_fallthru
          _
      $region36: #{constrain_rgb_batched.1} parent=5 // pred_fallthru
        _
    $region6: #{constrain_rgb_batched.1} parent=1 // loop_footer
      %s12 = sadd.s32 1, %s8
    $region7: #{constrain_rgb_batched.1} parent=1 // loop_footer_branch
      %7 = sbr.rel target = $region3
    $region8: #{constrain_rgb_batched.1} parent=1 // loop_exit
      _
    %165 = vsyncpa [#allocation3], 1
    %s166 = scalar_lea.sflag [#allocation3], 1
    %167 = vsyncpa %s166, 1

</llo_original>
